<compile_context>
chip_gen: v7x
topology: tpu7x:2x2x1
jax: 0.10.0
libtpu: 0.0.40
codegen_flags: <defaults>
</compile_context>

<pallas_src>
import functools
import math

import jax
import jax.numpy as jnp
import numpy as np
from jax.experimental import pallas as pl
from jax.experimental.pallas import tpu as pltpu


def _cameras_kernel(rot_ref, cpos_ref, foc_ref, pts_ref, out_ref, *,
                    height, width, normalize_uv):
    """Per-(camera b, point-tile n) projection.

    rot_ref  : SMEM (B, 9)           f32  -- gathered rotations (row-major)
    cpos_ref : SMEM (B, 3)           f32  -- gathered camera positions
    foc_ref  : SMEM (B,)             f32  -- gathered focal lengths
    pts_ref  : VMEM (1, 3, TS, 128)  f32  -- world points, channel-first slabs
    out_ref  : VMEM (1, 3, TS, 128)  f32  -- rows: u, v, z
    """
    b = pl.program_id(0)

    # world -> camera:  q = R @ (p - c)   (dense (TS,128) slabs on the VPU,
    # scalar-broadcast FMAs; a 3x3 jnp.dot would waste the 128-wide MXU)
    x = pts_ref[0, 0] - cpos_ref[b, 0]
    y = pts_ref[0, 1] - cpos_ref[b, 1]
    z = pts_ref[0, 2] - cpos_ref[b, 2]

    q0 = rot_ref[b, 0] * x + rot_ref[b, 1] * y + rot_ref[b, 2] * z
    q1 = rot_ref[b, 3] * x + rot_ref[b, 4] * y + rot_ref[b, 5] * z
    q2 = rot_ref[b, 6] * x + rot_ref[b, 7] * y + rot_ref[b, 8] * z

    # one perspective-divide reciprocal instead of two divides
    # (approx=False keeps full-precision Newton correction -> bitwise-close
    #  to the reference division; flip to approx=True if tolerance allows)
    inv = pl.reciprocal(q2, approx=False)
    r0 = q0 * inv
    r1 = q1 * inv

    f = foc_ref[b]
    if normalize_uv:
        # intrinsics + y-flip + normalization fold to u = f*q0/q2, v = -f*q1/q2
        u = f * r0
        v = (-f) * r1
    else:
        # u = (f*W/2*q0 + W/2*q2)/q2 = f*W/2 * q0/q2 + W/2
        # v = H - (f*H/2*q1 + H/2*q2)/q2 = H/2 - f*H/2 * q1/q2
        u = (f * (width * 0.5)) * r0 + (width * 0.5)
        v = (height * 0.5) - (f * (height * 0.5)) * r1

    out_ref[0, 0] = u
    out_ref[0, 1] = v
    out_ref[0, 2] = q2


def _pick_tile_rows(rows, ts_rows):
    """Largest valid sublane-tile <= ts_rows: divides rows and is either a
    multiple of 8 or equal to rows (full-extent block)."""
    ts = min(ts_rows, rows)
    while ts > 1 and (rows % ts or (ts % 8 and ts != rows)):
        ts -= 1
    if rows % ts or (ts % 8 and ts != rows):
        ts = rows
    return ts


def cameras_forward_cf(points, camera_indices, rotation, camera_position,
                       focal_length, height, width, normalize_uv=False,
                       tile_points=8192):
    """Channel-first projection: returns (B, 3, N) with rows (u, v, z).

    points:          (B, N, 3) world-space points
    camera_indices:  (B,) int32 indices into the camera bank
    """
    B, N, _ = points.shape
    assert N % 128 == 0, "N must be a multiple of 128"
    rows = N // 128
    ts = _pick_tile_rows(rows, max(1, tile_points // 128))

    # Glue: gather per-sample camera parameters; fold the point axis onto
    # (sublane, lane).  The (B,N,3)->(B,3,N) transpose is one extra XLA HBM
    # pass; callers that already hold channel-first points can skip it.
    rot_g = rotation[camera_indices].reshape(B, 9).astype(jnp.float32)
    cpos_g = camera_position[camera_indices].astype(jnp.float32)
    foc_g = focal_length[camera_indices].astype(jnp.float32)
    pts_cf = jnp.transpose(points, (0, 2, 1)).astype(jnp.float32)
    pts_cf = pts_cf.reshape(B, 3, rows, 128)

    kernel = functools.partial(
        _cameras_kernel,
        height=float(height), width=float(width),
        normalize_uv=bool(normalize_uv))

    smem_spec = pl.BlockSpec(memory_space=pltpu.MemorySpace.SMEM)
    out_cf = pl.pallas_call(
        kernel,
        grid=(B, rows // ts),
        in_specs=[
            smem_spec,                                                # rotation
            smem_spec,                                                # position
            smem_spec,                                                # focal
            pl.BlockSpec((1, 3, ts, 128), lambda b, n: (b, 0, n, 0)),  # points
        ],
        out_specs=pl.BlockSpec((1, 3, ts, 128), lambda b, n: (b, 0, n, 0)),
        out_shape=jax.ShapeDtypeStruct((B, 3, rows, 128), jnp.float32),
        compiler_params=pltpu.CompilerParams(
            dimension_semantics=("parallel", "parallel")),
    )(rot_g, cpos_g, foc_g, pts_cf)

    return out_cf.reshape(B, 3, N)


def cameras_forward(points, camera_indices, rotation, camera_position,
                    focal_length, height, width, normalize_uv=False,
                    tile_points=8192):
    """PyTorch-layout wrapper: returns uv (B, N, 2), z (B, N).

    Note: the final uv transpose is an extra HBM pass; use
    cameras_forward_cf directly if downstream can consume channel-first.
    """
    out_cf = cameras_forward_cf(points, camera_indices, rotation,
                                camera_position, focal_length, height, width,
                                normalize_uv=normalize_uv,
                                tile_points=tile_points)
    uv = jnp.transpose(out_cf[:, :2, :], (0, 2, 1))   # (B, N, 2)
    zdepth = out_cf[:, 2, :]                          # (B, N)
    return uv, zdepth


def cameras_forward_ref(points, camera_indices, rotation, camera_position,
                        focal_length, height, width, normalize_uv=False):
    """Pure-JAX reference that mirrors the PyTorch forward pass."""
    B = rotation.shape[0]
    R = rotation[camera_indices]
    c = camera_position[camera_indices][:, None, :]
    p = points - c
    p = jnp.matmul(p, jnp.transpose(R, (0, 2, 1)))
    K = jnp.tile(jnp.eye(3, dtype=rotation.dtype)[None], (B, 1, 1))
    K = K.at[:, 0, 0].set(focal_length * width / 2)
    K = K.at[:, 1, 1].set(focal_length * height / 2)
    K = K.at[:, 0, 2].set(width / 2)
    K = K.at[:, 1, 2].set(height / 2)
    Kg = K[camera_indices]
    p = jnp.matmul(p, jnp.transpose(Kg, (0, 2, 1)))
    uv = p[..., :2] / p[..., 2:]
    uv = uv.at[..., 1].set(height - uv[..., 1])
    if normalize_uv:
        uv = uv.at[..., 0].set(uv[..., 0] / width * 2 - 1)
        uv = uv.at[..., 1].set(uv[..., 1] / height * 2 - 1)
    return uv, p[..., -1]


# TODO(synk): Cameras.emit_rays / from_calibration_matrix are not part of
# forward() and are not implemented here.

if __name__ == "__main__":
    key = jax.random.PRNGKey(0)
    k_rot, k_pos, k_foc, k_pts = jax.random.split(key, 4)

    num_cameras = 3
    B, N = 2, 256
    height, width = 32, 48

    # Deterministic "parameters" (Cameras.__init__ shapes):
    #   rotation (num_cameras, 3, 3) -- orthonormal, near identity
    #   camera_position (num_cameras, 3)
    #   focal_length (num_cameras,)
    A = jnp.eye(3, dtype=jnp.float32)[None] + \
        0.1 * jax.random.normal(k_rot, (num_cameras, 3, 3), dtype=jnp.float32)
    rotation, _ = jnp.linalg.qr(A)
    rotation = rotation.astype(jnp.float32)
    camera_position = 0.1 * jax.random.normal(
        k_pos, (num_cameras, 3), dtype=jnp.float32)
    focal_length = jax.random.uniform(
        k_foc, (num_cameras,), minval=0.8, maxval=1.5, dtype=jnp.float32)

    # Forward inputs: points (B, N, 3) with depth safely away from zero.
    points = jax.random.uniform(
        k_pts, (B, N, 3), minval=1.0, maxval=2.0, dtype=jnp.float32)
    camera_indices = jnp.array([2, 0], dtype=jnp.int32)

    for norm in (False, True):
        uv, z = cameras_forward(points, camera_indices, rotation,
                                camera_position, focal_length, height, width,
                                normalize_uv=norm)
        jax.block_until_ready((uv, z))

        uv_ref, z_ref = cameras_forward_ref(points, camera_indices, rotation,
                                            camera_position, focal_length,
                                            height, width, normalize_uv=norm)
        np.testing.assert_allclose(np.asarray(uv), np.asarray(uv_ref),
                                   rtol=1e-5, atol=1e-3)
        np.testing.assert_allclose(np.asarray(z), np.asarray(z_ref),
                                   rtol=1e-5, atol=1e-4)
        assert uv.shape == (B, N, 2) and z.shape == (B, N)

    print("KERNEL_OK")
</pallas_src>

<mosaic_0001>
module attributes {stable_mosaic.version = 11 : i64} {
  func.func @_cameras_kernel(%arg0: i32, %arg1: i32, %arg2: memref<2x9xf32, #tpu.memory_space<smem>>, %arg3: memref<2x3xf32, #tpu.memory_space<smem>>, %arg4: memref<2xf32, #tpu.memory_space<smem>>, %arg5: memref<1x3x2x128xf32, #tpu.memory_space<vmem>>, %arg6: memref<1x3x2x128xf32, #tpu.memory_space<vmem>>) attributes {dimension_semantics = [#tpu.dimension_semantics<parallel>, #tpu.dimension_semantics<parallel>], iteration_bounds = array<i64: 2, 1>, scalar_prefetch = 0 : i64, scratch_operands = 0 : i64, tpu.core_type = #tpu.core_type<tc>, window_params = [{transform_indices = @transform_0, window_bounds = array<i64: 2, 9>}, {transform_indices = @transform_1, window_bounds = array<i64: 2, 3>}, {transform_indices = @transform_2, window_bounds = array<i64: 2>}, {transform_indices = @transform_3, window_bounds = array<i64: 1, 3, 2, 128>}, {transform_indices = @transform_4, window_bounds = array<i64: 1, 3, 2, 128>}]} {
    %c0 = arith.constant 0 : index
    %c0_0 = arith.constant 0 : index
    %c0_1 = arith.constant 0 : index
    %c0_2 = arith.constant 0 : index
    %0 = vector.load %arg5[%c0, %c0_0, %c0_1, %c0_2] : memref<1x3x2x128xf32, #tpu.memory_space<vmem>>, vector<1x1x2x128xf32>
    %1 = vector.shape_cast %0 : vector<1x1x2x128xf32> to vector<2x128xf32>
    %2 = arith.index_cast %arg0 : i32 to index
    %c0_3 = arith.constant 0 : index
    %3 = memref.load %arg3[%2, %c0_3] : memref<2x3xf32, #tpu.memory_space<smem>>
    %4 = vector.broadcast %3 : f32 to vector<2x128xf32>
    %5 = arith.subf %1, %4 : vector<2x128xf32>
    %c0_4 = arith.constant 0 : index
    %c1 = arith.constant 1 : index
    %c0_5 = arith.constant 0 : index
    %c0_6 = arith.constant 0 : index
    %6 = vector.load %arg5[%c0_4, %c1, %c0_5, %c0_6] : memref<1x3x2x128xf32, #tpu.memory_space<vmem>>, vector<1x1x2x128xf32>
    %7 = vector.shape_cast %6 : vector<1x1x2x128xf32> to vector<2x128xf32>
    %8 = arith.index_cast %arg0 : i32 to index
    %c1_7 = arith.constant 1 : index
    %9 = memref.load %arg3[%8, %c1_7] : memref<2x3xf32, #tpu.memory_space<smem>>
    %10 = vector.broadcast %9 : f32 to vector<2x128xf32>
    %11 = arith.subf %7, %10 : vector<2x128xf32>
    %c0_8 = arith.constant 0 : index
    %c2 = arith.constant 2 : index
    %c0_9 = arith.constant 0 : index
    %c0_10 = arith.constant 0 : index
    %12 = vector.load %arg5[%c0_8, %c2, %c0_9, %c0_10] : memref<1x3x2x128xf32, #tpu.memory_space<vmem>>, vector<1x1x2x128xf32>
    %13 = vector.shape_cast %12 : vector<1x1x2x128xf32> to vector<2x128xf32>
    %14 = arith.index_cast %arg0 : i32 to index
    %c2_11 = arith.constant 2 : index
    %15 = memref.load %arg3[%14, %c2_11] : memref<2x3xf32, #tpu.memory_space<smem>>
    %16 = vector.broadcast %15 : f32 to vector<2x128xf32>
    %17 = arith.subf %13, %16 : vector<2x128xf32>
    %18 = arith.index_cast %arg0 : i32 to index
    %c0_12 = arith.constant 0 : index
    %19 = memref.load %arg2[%18, %c0_12] : memref<2x9xf32, #tpu.memory_space<smem>>
    %20 = vector.broadcast %19 : f32 to vector<2x128xf32>
    %21 = arith.mulf %20, %5 : vector<2x128xf32>
    %22 = arith.index_cast %arg0 : i32 to index
    %c1_13 = arith.constant 1 : index
    %23 = memref.load %arg2[%22, %c1_13] : memref<2x9xf32, #tpu.memory_space<smem>>
    %24 = vector.broadcast %23 : f32 to vector<2x128xf32>
    %25 = arith.mulf %24, %11 : vector<2x128xf32>
    %26 = arith.addf %21, %25 : vector<2x128xf32>
    %27 = arith.index_cast %arg0 : i32 to index
    %c2_14 = arith.constant 2 : index
    %28 = memref.load %arg2[%27, %c2_14] : memref<2x9xf32, #tpu.memory_space<smem>>
    %29 = vector.broadcast %28 : f32 to vector<2x128xf32>
    %30 = arith.mulf %29, %17 : vector<2x128xf32>
    %31 = arith.addf %26, %30 : vector<2x128xf32>
    %32 = arith.index_cast %arg0 : i32 to index
    %c3 = arith.constant 3 : index
    %33 = memref.load %arg2[%32, %c3] : memref<2x9xf32, #tpu.memory_space<smem>>
    %34 = vector.broadcast %33 : f32 to vector<2x128xf32>
    %35 = arith.mulf %34, %5 : vector<2x128xf32>
    %36 = arith.index_cast %arg0 : i32 to index
    %c4 = arith.constant 4 : index
    %37 = memref.load %arg2[%36, %c4] : memref<2x9xf32, #tpu.memory_space<smem>>
    %38 = vector.broadcast %37 : f32 to vector<2x128xf32>
    %39 = arith.mulf %38, %11 : vector<2x128xf32>
    %40 = arith.addf %35, %39 : vector<2x128xf32>
    %41 = arith.index_cast %arg0 : i32 to index
    %c5 = arith.constant 5 : index
    %42 = memref.load %arg2[%41, %c5] : memref<2x9xf32, #tpu.memory_space<smem>>
    %43 = vector.broadcast %42 : f32 to vector<2x128xf32>
    %44 = arith.mulf %43, %17 : vector<2x128xf32>
    %45 = arith.addf %40, %44 : vector<2x128xf32>
    %46 = arith.index_cast %arg0 : i32 to index
    %c6 = arith.constant 6 : index
    %47 = memref.load %arg2[%46, %c6] : memref<2x9xf32, #tpu.memory_space<smem>>
    %48 = vector.broadcast %47 : f32 to vector<2x128xf32>
    %49 = arith.mulf %48, %5 : vector<2x128xf32>
    %50 = arith.index_cast %arg0 : i32 to index
    %c7 = arith.constant 7 : index
    %51 = memref.load %arg2[%50, %c7] : memref<2x9xf32, #tpu.memory_space<smem>>
    %52 = vector.broadcast %51 : f32 to vector<2x128xf32>
    %53 = arith.mulf %52, %11 : vector<2x128xf32>
    %54 = arith.addf %49, %53 : vector<2x128xf32>
    %55 = arith.index_cast %arg0 : i32 to index
    %c8 = arith.constant 8 : index
    %56 = memref.load %arg2[%55, %c8] : memref<2x9xf32, #tpu.memory_space<smem>>
    %57 = vector.broadcast %56 : f32 to vector<2x128xf32>
    %58 = arith.mulf %57, %17 : vector<2x128xf32>
    %59 = arith.addf %54, %58 : vector<2x128xf32>
    %60 = tpu.reciprocal %59 : vector<2x128xf32> -> vector<2x128xf32>
    %61 = arith.mulf %31, %60 : vector<2x128xf32>
    %62 = arith.mulf %45, %60 : vector<2x128xf32>
    %63 = arith.index_cast %arg0 : i32 to index
    %64 = memref.load %arg4[%63] : memref<2xf32, #tpu.memory_space<smem>>
    %cst = arith.constant 2.400000e+01 : f32
    %65 = arith.mulf %64, %cst : f32
    %66 = vector.broadcast %65 : f32 to vector<2x128xf32>
    %67 = arith.mulf %66, %61 : vector<2x128xf32>
    %cst_15 = arith.constant 2.400000e+01 : f32
    %68 = vector.broadcast %cst_15 : f32 to vector<2x128xf32>
    %69 = arith.addf %67, %68 : vector<2x128xf32>
    %cst_16 = arith.constant 1.600000e+01 : f32
    %70 = arith.mulf %64, %cst_16 : f32
    %71 = vector.broadcast %70 : f32 to vector<2x128xf32>
    %72 = arith.mulf %71, %62 : vector<2x128xf32>
    %cst_17 = arith.constant 1.600000e+01 : f32
    %73 = vector.broadcast %cst_17 : f32 to vector<2x128xf32>
    %74 = arith.subf %73, %72 : vector<2x128xf32>
    %c0_18 = arith.constant 0 : index
    %c0_19 = arith.constant 0 : index
    %c0_20 = arith.constant 0 : index
    %c0_21 = arith.constant 0 : index
    %75 = vector.load %arg6[%c0_18, %c0_19, %c0_20, %c0_21] : memref<1x3x2x128xf32, #tpu.memory_space<vmem>>, vector<1x1x2x128xf32>
    %76 = vector.shape_cast %75 : vector<1x1x2x128xf32> to vector<2x128xf32>
    %77 = vector.shape_cast %69 : vector<2x128xf32> to vector<1x1x2x128xf32>
    tpu.vector_store %arg6[%c0_18, %c0_19, %c0_20, %c0_21], %77 {strides = array<i32>} : memref<1x3x2x128xf32, #tpu.memory_space<vmem>>, vector<1x1x2x128xf32>,
    %c0_22 = arith.constant 0 : index
    %c1_23 = arith.constant 1 : index
    %c0_24 = arith.constant 0 : index
    %c0_25 = arith.constant 0 : index
    %78 = vector.load %arg6[%c0_22, %c1_23, %c0_24, %c0_25] : memref<1x3x2x128xf32, #tpu.memory_space<vmem>>, vector<1x1x2x128xf32>
    %79 = vector.shape_cast %78 : vector<1x1x2x128xf32> to vector<2x128xf32>
    %80 = vector.shape_cast %74 : vector<2x128xf32> to vector<1x1x2x128xf32>
    tpu.vector_store %arg6[%c0_22, %c1_23, %c0_24, %c0_25], %80 {strides = array<i32>} : memref<1x3x2x128xf32, #tpu.memory_space<vmem>>, vector<1x1x2x128xf32>,
    %c0_26 = arith.constant 0 : index
    %c2_27 = arith.constant 2 : index
    %c0_28 = arith.constant 0 : index
    %c0_29 = arith.constant 0 : index
    %81 = vector.load %arg6[%c0_26, %c2_27, %c0_28, %c0_29] : memref<1x3x2x128xf32, #tpu.memory_space<vmem>>, vector<1x1x2x128xf32>
    %82 = vector.shape_cast %81 : vector<1x1x2x128xf32> to vector<2x128xf32>
    %83 = vector.shape_cast %59 : vector<2x128xf32> to vector<1x1x2x128xf32>
    tpu.vector_store %arg6[%c0_26, %c2_27, %c0_28, %c0_29], %83 {strides = array<i32>} : memref<1x3x2x128xf32, #tpu.memory_space<vmem>>, vector<1x1x2x128xf32>,
    return
  }
  func.func @transform_0(%arg0: i32, %arg1: i32) -> (i32, i32) {
    %c0_i32 = arith.constant 0 : i32
    %c0_i32_0 = arith.constant 0 : i32
    %c0_i32_1 = arith.constant 0 : i32
    return %c0_i32, %c0_i32_0 : i32, i32
  }
  func.func @transform_1(%arg0: i32, %arg1: i32) -> (i32, i32) {
    %c0_i32 = arith.constant 0 : i32
    %c0_i32_0 = arith.constant 0 : i32
    %c0_i32_1 = arith.constant 0 : i32
    return %c0_i32, %c0_i32_0 : i32, i32
  }
  func.func @transform_2(%arg0: i32, %arg1: i32) -> i32 {
    %c0_i32 = arith.constant 0 : i32
    %c0_i32_0 = arith.constant 0 : i32
    return %c0_i32 : i32
  }
  func.func @transform_3(%arg0: i32, %arg1: i32) -> (i32, i32, i32, i32) {
    %c0_i32 = arith.constant 0 : i32
    %c0_i32_0 = arith.constant 0 : i32
    %c0_i32_1 = arith.constant 0 : i32
    return %arg0, %c0_i32, %arg1, %c0_i32_0 : i32, i32, i32, i32
  }
  func.func @transform_4(%arg0: i32, %arg1: i32) -> (i32, i32, i32, i32) {
    %c0_i32 = arith.constant 0 : i32
    %c0_i32_0 = arith.constant 0 : i32
    %c0_i32_1 = arith.constant 0 : i32
    return %arg0, %c0_i32, %arg1, %c0_i32_0 : i32, i32, i32, i32
  }
}

</mosaic_0001>

<llo_original>
// kernel: tpu_custom_call.1
$region0: #{tpu_custom_call.1}
  #allocation0 [shape = 'u32[]', space=smem, size = 0x4, offset = 0x4, fixed_abs, tag = 'smem constant byte address 0x4 - core index']
  #allocation1 [shape = 'u32[144,128]{1,0:T(1,128)}', space=vmem, size = 0x12000, scoped, tag = 'internal scratch']
  %s0 = inlined_call_operand.hbm [shape: f32[2,9], index: 0, kind: input, shape index: {}]
  %s1 = inlined_call_operand.vmem [shape: f32[2,3], index: 1, kind: input, shape index: {}]
  %s2 = inlined_call_operand.vmem [shape: f32[2], index: 2, kind: input, shape index: {}]
  %s3 = inlined_call_operand.hbm [shape: f32[2,3,2,128], index: 3, kind: input, shape index: {}]
  %s4 = inlined_call_operand.hbm [shape: f32[2,3,2,128], index: 4, kind: output, shape index: {}]
  %s5 = sld [smem:[#allocation0]]
  $region65: #{tpu_custom_call.1} parent=0
    _
  %s7 = ssub.s32 1, %s5
  %s8 = scalar_select 0, %s7, %s5
  $region1: #{tpu_custom_call.1} parent=0
    #allocation2 [shape = 'u8[1024]{0}', space=smem, size = 0x400, scoped, tag = 'input window, operand 0, single buffered']
    #allocation3 [shape = 's32[2]{0}', space=sflag, size = 0x8, scoped, tag = 'scoped memory for tpu_custom_call.1']
    #allocation4 [shape = 's32[2]{0}', space=sflag, size = 0x8, scoped, tag = 'scoped memory for tpu_custom_call.1']
    #allocation5 [shape = 's32[2]{0}', space=sflag, size = 0x8, scoped, tag = 'scoped memory for tpu_custom_call.1']
    #allocation6 [shape = 's32[2]{0}', space=sflag, size = 0x8, scoped, tag = 'scoped memory for tpu_custom_call.1']
    #allocation7 [shape = 'u8[1024]{0}', space=smem, size = 0x400, scoped, tag = 'input window, operand 1, single buffered']
    #allocation8 [shape = 'u8[512]{0}', space=smem, size = 0x200, scoped, tag = 'input window, operand 2, single buffered']
    #allocation9 [shape = 's32[1]{0}', space=sflag, size = 0x4, scoped, tag = 'scoped memory for tpu_custom_call.1']
    #allocation10 [shape = 'u8[6144]{0}', space=vmem, size = 0x1800, scoped, tag = 'input window, operand 3']
    #allocation11 [shape = 'u8[6144]{0}', space=vmem, size = 0x1800, scoped, tag = 'output window, operand 0']
    %9 = vsyncpa [#allocation5], 0
    %10 = vsyncpa [#allocation6], 0
    %11 = vsyncpa [#allocation9], 0
    %12 = vsyncpa [#allocation3], 0
    %s13 = scalar_lea.sflag [#allocation3], 1
    %14 = vsyncpa %s13, 0
    %15 = vsyncpa [#allocation4], 0
    %s16 = scalar_lea.sflag [#allocation4], 1
    %17 = vsyncpa %s16, 0
    loop: start=0, step=1, limit=4
    $region2: #{tpu_custom_call.1} parent=1 // loop_pre_header
      _
    $region3: #{tpu_custom_call.1} parent=1 // loop_header
      %s19 = sphi 0, %s23
      %p20 = scmp.ge.s32.totalorder %s19, 4
      %s26 = sphi 0, %s38
      %s27 = sphi 0, %s34
      %s28 = sphi 0, %s26
      %s29 = sphi 0, %s27
      %s30 = sphi 0, %s28
      %s31 = sphi 0, %s29
      %s39 = sphi 0, %s39
      %s41 = sphi 0, %s39
      %s42 = sphi 0, %s41
      %s56 = sphi 0, %s42
      %s60 = sphi 0, %s60
      %s62 = sphi 0, %s60
      %s63 = sphi 0, %s62
      %s77 = sphi 0, %s63
      %s81 = sphi 0, %s81
      %s83 = sphi 0, %s81
      %s84 = sphi 0, %s83
      %s98 = sphi 0, %s84
      %s106 = sphi 0, %s108
      %s109 = sphi 0, %s106
      %s110 = sphi 0, %s109
      %s126 = sphi 0, %s110
      %s134 = sphi 0, %s136
      %s137 = sphi 0, %s134
      %s138 = sphi 0, %s137
      %s154 = sphi 0, %s138
    $region4: #{tpu_custom_call.1} parent=1 // loop_header_branch
      %22 = sbr.rel (%p20) target = $region8
    $region5: #{tpu_custom_call.1} parent=1 // loop_body
      %s24 = ssub.s32 %s19, 1
      %s25 = ssub.s32 %s19, 2
      %s32 = sadd.s32 1, %s27
      %p33 = scmp.ge.s32.totalorder %s32, 1
      %s34 = scalar_select %p33, 0, %s32
      %s35 = sadd.s32 1, %s26
      %s36 = scalar_select %p33, %s35, %s26
      %p37 = scmp.ge.s32.totalorder %s36, 2
      %s38 = scalar_select %p37, 0, %s36
      %s40 = sadd.s32 %s39, 1
      %p43 = scmp.eq.s32.totalorder %s19, 1
      %p44 = scmp.ne.s32.totalorder %s39, %s41
      %p45 = scmp.eq.s32.totalorder %s19, 0
      %p46 = por %p44, %p45
      %p47 = scmp.ne.s32.totalorder %s39, %s41
      %p48 = scmp.eq.s32.totalorder %s24, 1
      %p49 = por %p47, %p48
      %p50 = scmp.ne.s32.totalorder %s41, %s42
      %p51 = scmp.eq.s32.totalorder %s24, 0
      %p52 = por %p50, %p51
      %p53 = scmp.ne.s32.totalorder %s41, %s42
      %p54 = scmp.eq.s32.totalorder %s25, 1
      %p55 = por %p53, %p54
      %p57 = scmp.ne.s32.totalorder %s42, %s56
      %p58 = scmp.eq.s32.totalorder %s25, 0
      %p59 = por %p57, %p58
      %s61 = sadd.s32 %s60, 1
      %p64 = scmp.eq.s32.totalorder %s19, 1
      %p65 = scmp.ne.s32.totalorder %s60, %s62
      %p66 = scmp.eq.s32.totalorder %s19, 0
      %p67 = por %p65, %p66
      %p68 = scmp.ne.s32.totalorder %s60, %s62
      %p69 = scmp.eq.s32.totalorder %s24, 1
      %p70 = por %p68, %p69
      %p71 = scmp.ne.s32.totalorder %s62, %s63
      %p72 = scmp.eq.s32.totalorder %s24, 0
      %p73 = por %p71, %p72
      %p74 = scmp.ne.s32.totalorder %s62, %s63
      %p75 = scmp.eq.s32.totalorder %s25, 1
      %p76 = por %p74, %p75
      %p78 = scmp.ne.s32.totalorder %s63, %s77
      %p79 = scmp.eq.s32.totalorder %s25, 0
      %p80 = por %p78, %p79
      %s82 = sadd.s32 %s81, 1
      %p85 = scmp.eq.s32.totalorder %s19, 1
      %p86 = scmp.ne.s32.totalorder %s81, %s83
      %p87 = scmp.eq.s32.totalorder %s19, 0
      %p88 = por %p86, %p87
      %p89 = scmp.ne.s32.totalorder %s81, %s83
      %p90 = scmp.eq.s32.totalorder %s24, 1
      %p91 = por %p89, %p90
      %p92 = scmp.ne.s32.totalorder %s83, %s84
      %p93 = scmp.eq.s32.totalorder %s24, 0
      %p94 = por %p92, %p93
      %p95 = scmp.ne.s32.totalorder %s83, %s84
      %p96 = scmp.eq.s32.totalorder %s25, 1
      %p97 = por %p95, %p96
      %p99 = scmp.ne.s32.totalorder %s84, %s98
      %p100 = scmp.eq.s32.totalorder %s25, 0
      %p101 = por %p99, %p100
      %s102 = ssub.s32 %s26, %s38
      %s103 = ssub.s32 %s27, %s34
      %s104 = sor.u32 %s102, %s103
      %p105 = scmp.eq.s32.totalorder %s104, 0
      %s107 = sadd.s32 %s106, 1
      %s108 = scalar_select %p105, %s106, %s107
      %p111 = pneg %p105
      %p112 = scmp.eq.s32.totalorder %s19, 1
      %p113 = por %p111, %p112
      %p114 = scmp.ne.s32.totalorder %s106, %s109
      %p115 = scmp.eq.s32.totalorder %s19, 0
      %p116 = por %p114, %p115
      %p117 = scmp.ne.s32.totalorder %s106, %s109
      %p118 = scmp.eq.s32.totalorder %s24, 1
      %p119 = por %p117, %p118
      %p120 = scmp.ne.s32.totalorder %s109, %s110
      %p121 = scmp.eq.s32.totalorder %s24, 0
      %p122 = por %p120, %p121
      %p123 = scmp.ne.s32.totalorder %s109, %s110
      %p124 = scmp.eq.s32.totalorder %s25, 1
      %p125 = por %p123, %p124
      %p127 = scmp.ne.s32.totalorder %s110, %s126
      %p128 = scmp.eq.s32.totalorder %s25, 0
      %p129 = por %p127, %p128
      %s130 = ssub.s32 %s26, %s38
      %s131 = ssub.s32 %s27, %s34
      %s132 = sor.u32 %s130, %s131
      %p133 = scmp.eq.s32.totalorder %s132, 0
      %s135 = sadd.s32 %s134, 1
      %s136 = scalar_select %p133, %s134, %s135
      %p139 = pneg %p133
      %p140 = scmp.eq.s32.totalorder %s19, 1
      %p141 = por %p139, %p140
      %p142 = scmp.ne.s32.totalorder %s134, %s137
      %p143 = scmp.eq.s32.totalorder %s19, 0
      %p144 = por %p142, %p143
      %p145 = scmp.ne.s32.totalorder %s134, %s137
      %p146 = scmp.eq.s32.totalorder %s24, 1
      %p147 = por %p145, %p146
      %p148 = scmp.ne.s32.totalorder %s137, %s138
      %p149 = scmp.eq.s32.totalorder %s24, 0
      %p150 = por %p148, %p149
      %p151 = scmp.ne.s32.totalorder %s137, %s138
      %p152 = scmp.eq.s32.totalorder %s25, 1
      %p153 = por %p151, %p152
      %p155 = scmp.ne.s32.totalorder %s138, %s154
      %p156 = scmp.eq.s32.totalorder %s25, 0
      %p157 = por %p155, %p156
      %p158 = scmp.le.s32.totalorder 1, %s19
      %p159 = scmp.lt.s32.totalorder %s19, 3
      %p160 = pnand %p158, %p159
      %p161 = pneg %p160
      // Predicated region
      $region9: #{tpu_custom_call.1} parent=5 // pred_check
        _
      $region10: #{tpu_custom_call.1} parent=5 // pred_check_branch
        %163 = sbr.rel (%p160) target = $region12
      $region11: #{tpu_custom_call.1} parent=5 // pred_region
        %s164 = ssub.s32 %s19, 1
        // Predicated region
        $region13: #{tpu_custom_call.1} parent=11 // pred_check
          %p165 = pneg %p52
        $region14: #{tpu_custom_call.1} parent=11 // pred_check_branch
          %167 = sbr.rel (%p165) target = $region16
        $region15: #{tpu_custom_call.1} parent=11 // pred_region
          %s169 = ssub.s32 32, 32
          %170 = vsyncadd [#allocation5], %s169
          %173 = dma.hbm_to_smem %s0, 32, [#allocation2], [#allocation5]
        $region16: #{tpu_custom_call.1} parent=11 // pred_fallthru
          _
        // Predicated region
        $region17: #{tpu_custom_call.1} parent=11 // pred_check
          %p174 = pneg %p73
        $region18: #{tpu_custom_call.1} parent=11 // pred_check_branch
          %176 = sbr.rel (%p174) target = $region20
        $region19: #{tpu_custom_call.1} parent=11 // pred_region
          %s178 = ssub.s32 32, 32
          %179 = vsyncadd [#allocation6], %s178
          %s181 = sshll.u32 %s1, 4
          %s182 = int_to_ptr.vmem [resolvable:$true] %s181
          %184 = dma.vmem_to_smem %s182, 32, [#allocation7], [#allocation6]
        $region20: #{tpu_custom_call.1} parent=11 // pred_fallthru
          _
        // Predicated region
        $region21: #{tpu_custom_call.1} parent=11 // pred_check
          %p185 = pneg %p94
        $region22: #{tpu_custom_call.1} parent=11 // pred_check_branch
          %187 = sbr.rel (%p185) target = $region24
        $region23: #{tpu_custom_call.1} parent=11 // pred_region
          %s189 = ssub.s32 16, 16
          %190 = vsyncadd [#allocation9], %s189
          %s192 = sshll.u32 %s2, 4
          %s193 = int_to_ptr.vmem [resolvable:$true] %s192
          %195 = dma.vmem_to_smem %s193, 16, [#allocation8], [#allocation9]
        $region24: #{tpu_custom_call.1} parent=11 // pred_fallthru
          _
      $region12: #{tpu_custom_call.1} parent=5 // pred_fallthru
        _
      %p196 = scmp.lt.s32.totalorder %s19, 2
      // Predicated region
      $region25: #{tpu_custom_call.1} parent=5 // pred_check
        %p197 = pneg %p196
      $region26: #{tpu_custom_call.1} parent=5 // pred_check_branch
        %199 = sbr.rel (%p197) target = $region28
      $region27: #{tpu_custom_call.1} parent=5 // pred_region
        // Predicated region
        $region29: #{tpu_custom_call.1} parent=27 // pred_check
          %p200 = pneg %p116
        $region30: #{tpu_custom_call.1} parent=27 // pred_check_branch
          %202 = sbr.rel (%p200) target = $region32
        $region31: #{tpu_custom_call.1} parent=27 // pred_region
          %s203 = sand.u32 %s106, 1
          %s204 = scalar_lea.sflag [#allocation3], %s203
          %s205 = sand.u32 %s106, 1
          %s206 = smul.addr %s205, 6
          %s207 = scalar_lea.vmem [#allocation10], %s206
          %s209 = ssub.s32 96, 96
          %210 = vsyncadd %s204, %s209
          %s211 = smul.addr %s26, 3
          %s212 = sadd.s32 %s27, %s211
          %s213 = smul.addr %s212, 32
          %s214 = scalar_lea.hbm %s3, %s213
          %s215 = sshll.u32 %s207, 4
          %s216 = int_to_ptr.vmem [resolvable:$true] %s215
          %221 = dma.hbm_to_vmem [thread:$0]  %s214, 96, %s216, %s204, 32, 32, 2
        $region32: #{tpu_custom_call.1} parent=27 // pred_fallthru
          _
      $region28: #{tpu_custom_call.1} parent=5 // pred_fallthru
        _
      %p222 = scmp.le.s32.totalorder 1, %s19
      %p223 = scmp.lt.s32.totalorder %s19, 3
      %p224 = pnand %p222, %p223
      %p225 = pneg %p224
      // Predicated region
      $region33: #{tpu_custom_call.1} parent=5 // pred_check
        _
      $region34: #{tpu_custom_call.1} parent=5 // pred_check_branch
        %227 = sbr.rel (%p224) target = $region36
      $region35: #{tpu_custom_call.1} parent=5 // pred_region
        %s228 = ssub.s32 %s19, 1
        // Predicated region
        $region37: #{tpu_custom_call.1} parent=35 // pred_check
          %p229 = pneg %p52
        $region38: #{tpu_custom_call.1} parent=35 // pred_check_branch
          %231 = sbr.rel (%p229) target = $region40
        $region39: #{tpu_custom_call.1} parent=35 // pred_region
          %232 = dma.done [#allocation5], 32
        $region40: #{tpu_custom_call.1} parent=35 // pred_fallthru
          _
        // Predicated region
        $region41: #{tpu_custom_call.1} parent=35 // pred_check
          %p233 = pneg %p73
        $region42: #{tpu_custom_call.1} parent=35 // pred_check_branch
          %235 = sbr.rel (%p233) target = $region44
        $region43: #{tpu_custom_call.1} parent=35 // pred_region
          %236 = dma.done [#allocation6], 32
        $region44: #{tpu_custom_call.1} parent=35 // pred_fallthru
          _
        // Predicated region
        $region45: #{tpu_custom_call.1} parent=35 // pred_check
          %p237 = pneg %p94
        $region46: #{tpu_custom_call.1} parent=35 // pred_check_branch
          %239 = sbr.rel (%p237) target = $region48
        $region47: #{tpu_custom_call.1} parent=35 // pred_region
          %240 = dma.done [#allocation9], 16
        $region48: #{tpu_custom_call.1} parent=35 // pred_fallthru
          _
        %s241 = sand.u32 %s109, 1
        %s242 = scalar_lea.sflag [#allocation3], %s241
        %s243 = sand.u32 %s109, 1
        %s244 = smul.addr %s243, 6
        %s245 = scalar_lea.vmem [#allocation10], %s244
        // Predicated region
        $region49: #{tpu_custom_call.1} parent=35 // pred_check
          %p246 = pneg %p122
        $region50: #{tpu_custom_call.1} parent=35 // pred_check_branch
          %248 = sbr.rel (%p246) target = $region52
        $region51: #{tpu_custom_call.1} parent=35 // pred_region
          %249 = dma.done %s242, 96
        $region52: #{tpu_custom_call.1} parent=35 // pred_fallthru
          _
        %250 = sfence
        %p251 = pneg %p52
        %p252 = pneg %p49
        %p253 = pneg %p73
        %p254 = pneg %p70
        %p255 = pneg %p94
        %p256 = pneg %p91
        %s257 = sand.u32 %s109, 1
        %s258 = scalar_lea.sflag [#allocation3], %s257
        %s259 = sand.u32 %s109, 1
        %s260 = smul.addr %s259, 6
        %s261 = scalar_lea.vmem [#allocation10], %s260
        %p262 = pneg %p122
        %p263 = pneg %p119
        %p264 = pneg %p150
        %p265 = pneg %p147
        %s266 = sand.u32 %s137, 1
        %s267 = scalar_lea.sflag [#allocation4], %s266
        %s268 = sand.u32 %s137, 1
        %s269 = smul.addr %s268, 6
        %s270 = scalar_lea.vmem [#allocation11], %s269
        %v271 = vld [vmem:[%s245] sm:$0x3]
        %s272 = smul.u32 %s28, 128
        %s273 = sld [smem:[#allocation7 + %s272]]
        %v274 = vstv %s273
        %v275 = vsub.f32 %v271, %v274
        %s276 = scalar_lea.vmem %s245, 2 [#allocation10]
        %v277 = vld [vmem:[%s276] sm:$0x3]
        %s278 = sadd.s32 %s272, 1
        %s279 = sld [smem:[#allocation7 + %s278]]
        %v280 = vstv %s279
        %v281 = vsub.f32 %v277, %v280
        %s282 = scalar_lea.vmem %s245, 4 [#allocation10]
        %v283 = vld [vmem:[%s282] sm:$0x3]
        %s284 = sadd.s32 %s272, 2
        %s285 = sld [smem:[#allocation7 + %s284]]
        %v286 = vstv %s285
        %v287 = vsub.f32 %v283, %v286
        %s288 = sld [smem:[#allocation2 + %s272]]
        %v289 = vstv %s288
        %v290 = vmul.f32 %v289, %v275
        %s291 = sld [smem:[#allocation2 + %s278]]
        %v292 = vstv %s291
        %v293 = vmul.f32 %v292, %v281
        %v294 = vadd.f32 %v290, %v293
        %s295 = sld [smem:[#allocation2 + %s284]]
        %v296 = vstv %s295
        %v297 = vmul.f32 %v296, %v287
        %v298 = vadd.f32 %v294, %v297
        %s299 = sadd.s32 %s272, 3
        %s300 = sld [smem:[#allocation2 + %s299]]
        %v301 = vstv %s300
        %v302 = vmul.f32 %v301, %v275
        %s303 = sadd.s32 %s272, 4
        %s304 = sld [smem:[#allocation2 + %s303]]
        %v305 = vstv %s304
        %v306 = vmul.f32 %v305, %v281
        %v307 = vadd.f32 %v302, %v306
        %s308 = sadd.s32 %s272, 5
        %s309 = sld [smem:[#allocation2 + %s308]]
        %v310 = vstv %s309
        %v311 = vmul.f32 %v310, %v287
        %v312 = vadd.f32 %v307, %v311
        %s313 = sadd.s32 %s272, 6
        %s314 = sld [smem:[#allocation2 + %s313]]
        %v315 = vstv %s314
        %v316 = vmul.f32 %v315, %v275
        %s317 = sadd.s32 %s272, 7
        %s318 = sld [smem:[#allocation2 + %s317]]
        %v319 = vstv %s318
        %v320 = vmul.f32 %v319, %v281
        %v321 = vadd.f32 %v316, %v320
        %s322 = sadd.s32 %s272, 8
        %s323 = sld [smem:[#allocation2 + %s322]]
        %v324 = vstv %s323
        %v325 = vmul.f32 %v324, %v287
        %v326 = vadd.f32 %v321, %v325
        %v327 = vrcp.pop %v326
        %v328 = vmul.f32 %v298, %v327
        %v329 = vmul.f32 %v312, %v327
        %s330 = sld [smem:[#allocation8 + %s28]]
        %s331 = smul.f32 %s330, 24.0
        %v332 = vstv %s331
        %v333 = vmul.f32 %v332, %v328
        %v334 = vadd.f32 %v333, 24.0
        %s335 = smul.f32 %s330, 16.0
        %v336 = vstv %s335
        %v337 = vmul.f32 %v336, %v329
        %v338 = vsub.f32 16.0, %v337
        %339 = vst [vmem:[%s270] sm:$0x3] %v334
        %s340 = scalar_lea.vmem %s270, 2 [#allocation11]
        %341 = vst [vmem:[%s340] sm:$0x3] %v338
        %s342 = scalar_lea.vmem %s270, 4 [#allocation11]
        %343 = vst [vmem:[%s342] sm:$0x3] %v326
        %s344 = sand.u32 %s137, 1
        %s345 = scalar_lea.sflag [#allocation4], %s344
        %s346 = sand.u32 %s137, 1
        %s347 = smul.addr %s346, 6
        %s348 = scalar_lea.vmem [#allocation11], %s347
        // Predicated region
        $region53: #{tpu_custom_call.1} parent=35 // pred_check
          %p349 = pneg %p147
        $region54: #{tpu_custom_call.1} parent=35 // pred_check_branch
          %351 = sbr.rel (%p349) target = $region56
        $region55: #{tpu_custom_call.1} parent=35 // pred_region
          %s353 = ssub.s32 96, 96
          %354 = vsyncadd %s345, %s353
          %s355 = smul.addr %s28, 3
          %s356 = sadd.s32 %s29, %s355
          %s357 = smul.addr %s356, 32
          %s358 = scalar_lea.hbm %s4, %s357
          %s359 = sshll.u32 %s348, 4
          %s360 = int_to_ptr.vmem [resolvable:$true] %s359
          %365 = dma.vmem_to_hbm [thread:$0]  %s360, 96, %s358, %s345, 32, 32, 2
        $region56: #{tpu_custom_call.1} parent=35 // pred_fallthru
          _
      $region36: #{tpu_custom_call.1} parent=5 // pred_fallthru
        _
      %p366 = scmp.le.s32.totalorder 2, %s19
      // Predicated region
      $region57: #{tpu_custom_call.1} parent=5 // pred_check
        %p367 = pneg %p366
      $region58: #{tpu_custom_call.1} parent=5 // pred_check_branch
        %369 = sbr.rel (%p367) target = $region60
      $region59: #{tpu_custom_call.1} parent=5 // pred_region
        %s370 = ssub.s32 %s19, 2
        // Predicated region
        $region61: #{tpu_custom_call.1} parent=59 // pred_check
          %p371 = pneg %p153
        $region62: #{tpu_custom_call.1} parent=59 // pred_check_branch
          %373 = sbr.rel (%p371) target = $region64
        $region63: #{tpu_custom_call.1} parent=59 // pred_region
          %s374 = sand.u32 %s138, 1
          %s375 = scalar_lea.sflag [#allocation4], %s374
          %s376 = sand.u32 %s138, 1
          %s377 = smul.addr %s376, 6
          %s378 = scalar_lea.vmem [#allocation11], %s377
          %379 = dma.done %s375, 96
        $region64: #{tpu_custom_call.1} parent=59 // pred_fallthru
          _
      $region60: #{tpu_custom_call.1} parent=5 // pred_fallthru
        _
    $region6: #{tpu_custom_call.1} parent=1 // loop_footer
      %s23 = sadd.s32 1, %s19
    $region7: #{tpu_custom_call.1} parent=1 // loop_footer_branch
      %18 = sbr.rel target = $region3
    $region8: #{tpu_custom_call.1} parent=1 // loop_exit
      _
    %380 = vsyncpa [#allocation3], 1
    %s381 = scalar_lea.sflag [#allocation3], 1
    %382 = vsyncpa %s381, 1
    %383 = vsyncpa [#allocation4], 1
    %s384 = scalar_lea.sflag [#allocation4], 1
    %385 = vsyncpa %s384, 1
    %386 = vsyncpa [#allocation5], 1
    %s387 = scalar_lea.sflag [#allocation5], 1
    %388 = vsyncpa %s387, 1
    %389 = vsyncpa [#allocation6], 1
    %s390 = scalar_lea.sflag [#allocation6], 1
    %391 = vsyncpa %s390, 1
    %392 = vsyncpa [#allocation9], 1

</llo_original>
